<compile_context>
chip_gen: v7x
topology: tpu7x:2x2x1
jax: 0.10.0
libtpu: 0.0.40
codegen_flags: <defaults>
</compile_context>

<pallas_src>
import functools

import jax
import jax.numpy as jnp
from jax import lax
from jax.experimental import pallas as pl
from jax.experimental.pallas import tpu as pltpu


def _conv_res_kernel(xt_ref, w2_ref, out_ref, patch_ref, *, ks, p, W, C, TW):
    # xt_ref   : (1, 1, C, TW + 2*halo) halo'd, zero-padded, spatially-flattened input row tile
    # w2_ref   : (C, ks*ks*C)           w2[co, (kh*ks+kw)*C + ci] = weight[co, ci, kh, kw]
    # out_ref  : (1, C, TW)             lane-dense output tile (flattened spatial on lanes)
    # patch_ref: (ks*ks*C, TW) scratch  im2col matrix -> single fat matmul (K = ks*ks*C)

    # Precompute (hoist) the width-boundary masks once per kw; reused for every kh.
    col = lax.broadcasted_iota(jnp.int32, (C, TW), 1) % W  # output column w for every lane
    col_masks = {}
    for kw in range(ks):
        if kw != p:
            d = kw - p
            col_masks[kw] = (col + d >= 0) & (col + d < W)

    for kh in range(ks):
        for kw in range(ks):
            t = kh * ks + kw
            start = kh * W + kw                      # static offset into the halo'd tile
            sl = xt_ref[0, 0, :, start:start + TW]   # (C, TW) lane-dense load, no reshape
            if kw != p:
                # zero contributions that would wrap across a row boundary (width padding)
                sl = jnp.where(col_masks[kw], sl, jnp.zeros_like(sl))
            patch_ref[t * C:(t + 1) * C, :] = sl

    ctr = p * ks + p  # center tap == the unshifted input == the residual
    conv = jnp.dot(w2_ref[...], patch_ref[...], preferred_element_type=jnp.float32)  # (C, TW)
    out_ref[0] = (patch_ref[ctr * C:(ctr + 1) * C, :] + conv).astype(out_ref.dtype)


def _pick_tile_rows(H, W, C, ks, budget_bytes=4 << 20):
    """Largest row-tile TH (divisor of H) whose working set fits the budget while keeping the
    flattened output tile (TH*W) a multiple of 128 lanes (or the full image)."""
    bytes_per_row = 4 * W * C * (ks * ks + 4)  # im2col scratch + double-buffered in/out rows
    max_rows = max(1, budget_bytes // bytes_per_row)
    if H <= max_rows:
        return H
    for th in range(int(max_rows), 0, -1):
        if H % th == 0 and (th * W) % 128 == 0:
            return th
    return H  # fallback: single whole-image tile


def conv3_forward(feat_nchw, weight_oihw, *, tile_rows=None):
    """feat: (N, C, H, W); weight: (C, C, ks, ks) OIHW, no bias. Returns feat + conv(feat)."""
    N, C, H, W = feat_nchw.shape
    Cout, Cin, ks, ks2 = weight_oihw.shape
    assert Cout == C and Cin == C and ks == ks2
    assert ks % 2 == 1, "conv_3: only odd ks gives 'same'-shaped output with padding=ks//2"
    p = ks // 2
    HW = H * W
    halo = p * W + p                                  # flat-coordinate halo on each side
    KC = ks * ks * C

    TH = tile_rows if tile_rows is not None else _pick_tile_rows(H, W, C, ks)
    assert H % TH == 0 and (TH == H or (TH * W) % 128 == 0), "invalid tile_rows"
    R = H // TH
    TW = TH * W
    Ltile = TW + 2 * halo

    # ---- wrapper glue (layout only; no feature-map transposes) ----
    xf = jnp.pad(feat_nchw.reshape(N, C, HW), ((0, 0), (0, 0), (halo, halo)))  # (N, C, HW+2h)
    if R == 1:
        xtiles = xf[:, None]                                                    # (N, 1, C, Ltile)
    else:  # overlapping (halo'd) row tiles so the kernel only needs static slices
        xtiles = jnp.stack([xf[:, :, r * TW:r * TW + Ltile] for r in range(R)], axis=1)
    # weight OIHW -> (C, ks*ks*C) so the conv is a single matmul with K = ks*ks*C
    w2 = jnp.transpose(weight_oihw, (0, 2, 3, 1)).reshape(C, KC).astype(feat_nchw.dtype)

    kernel = functools.partial(_conv_res_kernel, ks=ks, p=p, W=W, C=C, TW=TW)

    out_flat = pl.pallas_call(
        kernel,
        out_shape=jax.ShapeDtypeStruct((N, C, HW), feat_nchw.dtype),
        grid_spec=pltpu.PrefetchScalarGridSpec(
            num_scalar_prefetch=0,
            grid=(N, R),
            in_specs=[
                pl.BlockSpec((1, 1, C, Ltile), lambda n, r: (n, r, 0, 0)),
                pl.BlockSpec((C, KC), lambda n, r: (0, 0)),
            ],
            out_specs=pl.BlockSpec((1, C, TW), lambda n, r: (n, 0, r)),
            scratch_shapes=[pltpu.VMEM((KC, TW), feat_nchw.dtype)],
        ),
        compiler_params=pltpu.CompilerParams(
            dimension_semantics=("parallel", "parallel"),
        ),
    )(xtiles, w2)

    return out_flat.reshape(N, C, H, W)


def _reference(feat_nchw, weight_oihw, ks):
    p = ks // 2
    conv = lax.conv_general_dilated(
        feat_nchw, weight_oihw,
        window_strides=(1, 1),
        padding=((p, p), (p, p)),
        dimension_numbers=("NCHW", "OIHW", "NCHW"),
    )
    return feat_nchw + conv


if __name__ == "__main__":
    N, dim, H, W = 2, 8, 16, 16
    ks = 3

    key = jax.random.PRNGKey(0)
    k_feat, k_w = jax.random.split(key)
    feat = jax.random.normal(k_feat, (N, dim, H, W), dtype=jnp.float32)
    fan_in = dim * ks * ks
    bound = 1.0 / (fan_in ** 0.5)
    weight = jax.random.uniform(
        k_w, (dim, dim, ks, ks), dtype=jnp.float32, minval=-bound, maxval=bound
    )

    ref = _reference(feat, weight, ks)

    # Default tiling: whole image per grid step for this small shape (grid = (N, 1)).
    out = jax.block_until_ready(conv3_forward(feat, weight))
    assert out.shape == ref.shape
    assert jnp.allclose(out, ref, atol=1e-4, rtol=1e-4), "mismatch vs conv reference (auto tiling)"

    # Forced row tiling: exercises the halo'd multi-tile path (grid = (N, 2), 128-lane out tiles).
    out_tiled = jax.block_until_ready(conv3_forward(feat, weight, tile_rows=8))
    assert jnp.allclose(out_tiled, ref, atol=1e-4, rtol=1e-4), "mismatch vs conv reference (row tiling)"

    print("KERNEL_OK")
</pallas_src>

<mosaic_0001>
module attributes {stable_mosaic.version = 11 : i64} {
  func.func @_conv_res_kernel(%arg0: i32, %arg1: i32, %arg2: memref<1x1x8x290xf32, #tpu.memory_space<vmem>>, %arg3: memref<8x72xf32, #tpu.memory_space<vmem>>, %arg4: memref<1x8x256xf32, #tpu.memory_space<vmem>>, %arg5: memref<72x256xf32, #tpu.memory_space<vmem>>) attributes {dimension_semantics = [#tpu.dimension_semantics<parallel>, #tpu.dimension_semantics<parallel>], iteration_bounds = array<i64: 2, 1>, scalar_prefetch = 0 : i64, scratch_operands = 1 : i64, tpu.core_type = #tpu.core_type<tc>, window_params = [{transform_indices = @transform_0, window_bounds = array<i64: 1, 1, 8, 290>}, {pipeline_mode = #tpu.pipeline_mode<synchronous>, transform_indices = @transform_1, window_bounds = array<i64: 8, 72>}, {transform_indices = @transform_2, window_bounds = array<i64: 1, 8, 256>}]} {
    %0 = tpu.iota {dimensions = array<i32: 1>} : vector<8x256xi32>
    %c16_i32 = arith.constant 16 : i32
    %c0_i32 = arith.constant 0 : i32
    %1 = arith.cmpi eq, %c16_i32, %c0_i32 : i32
    %c1_i32 = arith.constant 1 : i32
    %2 = arith.select %1, %c1_i32, %c16_i32 : i32
    %3 = vector.broadcast %2 : i32 to vector<8x256xi32>
    %4 = arith.remsi %0, %3 : vector<8x256xi32>
    %c0_i32_0 = arith.constant 0 : i32
    %5 = vector.broadcast %c0_i32_0 : i32 to vector<8x256xi32>
    %6 = arith.cmpi ne, %4, %5 : vector<8x256xi32>
    %c0_i32_1 = arith.constant 0 : i32
    %7 = vector.broadcast %c0_i32_1 : i32 to vector<8x256xi32>
    %8 = arith.cmpi slt, %4, %7 : vector<8x256xi32>
    %c0_i32_2 = arith.constant 0 : i32
    %9 = arith.cmpi slt, %2, %c0_i32_2 : i32
    %10 = vector.broadcast %9 : i1 to vector<8x256xi1>
    %11 = vector.broadcast %10 : vector<8x256xi1> to vector<8x256xi1>
    %12 = arith.xori %8, %11 : vector<8x256xi1>
    %13 = arith.andi %12, %6 : vector<8x256xi1>
    %14 = vector.broadcast %2 : i32 to vector<8x256xi32>
    %15 = arith.addi %4, %14 : vector<8x256xi32>
    %16 = arith.select %13, %15, %4 : vector<8x256xi1>, vector<8x256xi32>
    %c-1_i32 = arith.constant -1 : i32
    %17 = vector.broadcast %c-1_i32 : i32 to vector<8x256xi32>
    %18 = arith.addi %16, %17 : vector<8x256xi32>
    %c0_i32_3 = arith.constant 0 : i32
    %19 = vector.broadcast %c0_i32_3 : i32 to vector<8x256xi32>
    %20 = arith.cmpi sge, %18, %19 : vector<8x256xi32>
    %c-1_i32_4 = arith.constant -1 : i32
    %21 = vector.broadcast %c-1_i32_4 : i32 to vector<8x256xi32>
    %22 = arith.addi %16, %21 : vector<8x256xi32>
    %c16_i32_5 = arith.constant 16 : i32
    %23 = vector.broadcast %c16_i32_5 : i32 to vector<8x256xi32>
    %24 = arith.cmpi slt, %22, %23 : vector<8x256xi32>
    %25 = arith.andi %20, %24 : vector<8x256xi1>
    %c1_i32_6 = arith.constant 1 : i32
    %26 = vector.broadcast %c1_i32_6 : i32 to vector<8x256xi32>
    %27 = arith.addi %16, %26 : vector<8x256xi32>
    %c0_i32_7 = arith.constant 0 : i32
    %28 = vector.broadcast %c0_i32_7 : i32 to vector<8x256xi32>
    %29 = arith.cmpi sge, %27, %28 : vector<8x256xi32>
    %c1_i32_8 = arith.constant 1 : i32
    %30 = vector.broadcast %c1_i32_8 : i32 to vector<8x256xi32>
    %31 = arith.addi %16, %30 : vector<8x256xi32>
    %c16_i32_9 = arith.constant 16 : i32
    %32 = vector.broadcast %c16_i32_9 : i32 to vector<8x256xi32>
    %33 = arith.cmpi slt, %31, %32 : vector<8x256xi32>
    %34 = arith.andi %29, %33 : vector<8x256xi1>
    %c0 = arith.constant 0 : index
    %c0_10 = arith.constant 0 : index
    %c0_11 = arith.constant 0 : index
    %c0_12 = arith.constant 0 : index
    %35 = vector.load %arg2[%c0, %c0_10, %c0_11, %c0_12] : memref<1x1x8x290xf32, #tpu.memory_space<vmem>>, vector<1x1x8x256xf32>
    %36 = vector.shape_cast %35 : vector<1x1x8x256xf32> to vector<8x256xf32>
    %cst = arith.constant 0.000000e+00 : f32
    %37 = vector.broadcast %cst : f32 to vector<8x256xf32>
    %38 = arith.select %25, %36, %37 : vector<8x256xi1>, vector<8x256xf32>
    %c0_13 = arith.constant 0 : index
    %c0_14 = arith.constant 0 : index
    %39 = vector.load %arg5[%c0_13, %c0_14] : memref<72x256xf32, #tpu.memory_space<vmem>>, vector<8x256xf32>
    tpu.vector_store %arg5[%c0_13, %c0_14], %38 {strides = array<i32>} : memref<72x256xf32, #tpu.memory_space<vmem>>, vector<8x256xf32>,
    %c0_15 = arith.constant 0 : index
    %c0_16 = arith.constant 0 : index
    %c0_17 = arith.constant 0 : index
    %c1 = arith.constant 1 : index
    %40 = vector.load %arg2[%c0_15, %c0_16, %c0_17, %c1] : memref<1x1x8x290xf32, #tpu.memory_space<vmem>>, vector<1x1x8x256xf32>
    %41 = vector.shape_cast %40 : vector<1x1x8x256xf32> to vector<8x256xf32>
    %c8 = arith.constant 8 : index
    %c0_18 = arith.constant 0 : index
    %42 = vector.load %arg5[%c8, %c0_18] : memref<72x256xf32, #tpu.memory_space<vmem>>, vector<8x256xf32>
    tpu.vector_store %arg5[%c8, %c0_18], %41 {strides = array<i32>} : memref<72x256xf32, #tpu.memory_space<vmem>>, vector<8x256xf32>,
    %c0_19 = arith.constant 0 : index
    %c0_20 = arith.constant 0 : index
    %c0_21 = arith.constant 0 : index
    %c2 = arith.constant 2 : index
    %43 = vector.load %arg2[%c0_19, %c0_20, %c0_21, %c2] : memref<1x1x8x290xf32, #tpu.memory_space<vmem>>, vector<1x1x8x256xf32>
    %44 = vector.shape_cast %43 : vector<1x1x8x256xf32> to vector<8x256xf32>
    %cst_22 = arith.constant 0.000000e+00 : f32
    %45 = vector.broadcast %cst_22 : f32 to vector<8x256xf32>
    %46 = arith.select %34, %44, %45 : vector<8x256xi1>, vector<8x256xf32>
    %c16 = arith.constant 16 : index
    %c0_23 = arith.constant 0 : index
    %47 = vector.load %arg5[%c16, %c0_23] : memref<72x256xf32, #tpu.memory_space<vmem>>, vector<8x256xf32>
    tpu.vector_store %arg5[%c16, %c0_23], %46 {strides = array<i32>} : memref<72x256xf32, #tpu.memory_space<vmem>>, vector<8x256xf32>,
    %c0_24 = arith.constant 0 : index
    %c0_25 = arith.constant 0 : index
    %c0_26 = arith.constant 0 : index
    %c16_27 = arith.constant 16 : index
    %48 = vector.load %arg2[%c0_24, %c0_25, %c0_26, %c16_27] : memref<1x1x8x290xf32, #tpu.memory_space<vmem>>, vector<1x1x8x256xf32>
    %49 = vector.shape_cast %48 : vector<1x1x8x256xf32> to vector<8x256xf32>
    %cst_28 = arith.constant 0.000000e+00 : f32
    %50 = vector.broadcast %cst_28 : f32 to vector<8x256xf32>
    %51 = arith.select %25, %49, %50 : vector<8x256xi1>, vector<8x256xf32>
    %c24 = arith.constant 24 : index
    %c0_29 = arith.constant 0 : index
    %52 = vector.load %arg5[%c24, %c0_29] : memref<72x256xf32, #tpu.memory_space<vmem>>, vector<8x256xf32>
    tpu.vector_store %arg5[%c24, %c0_29], %51 {strides = array<i32>} : memref<72x256xf32, #tpu.memory_space<vmem>>, vector<8x256xf32>,
    %c0_30 = arith.constant 0 : index
    %c0_31 = arith.constant 0 : index
    %c0_32 = arith.constant 0 : index
    %c17 = arith.constant 17 : index
    %53 = vector.load %arg2[%c0_30, %c0_31, %c0_32, %c17] : memref<1x1x8x290xf32, #tpu.memory_space<vmem>>, vector<1x1x8x256xf32>
    %54 = vector.shape_cast %53 : vector<1x1x8x256xf32> to vector<8x256xf32>
    %c32 = arith.constant 32 : index
    %c0_33 = arith.constant 0 : index
    %55 = vector.load %arg5[%c32, %c0_33] : memref<72x256xf32, #tpu.memory_space<vmem>>, vector<8x256xf32>
    tpu.vector_store %arg5[%c32, %c0_33], %54 {strides = array<i32>} : memref<72x256xf32, #tpu.memory_space<vmem>>, vector<8x256xf32>,
    %c0_34 = arith.constant 0 : index
    %c0_35 = arith.constant 0 : index
    %c0_36 = arith.constant 0 : index
    %c18 = arith.constant 18 : index
    %56 = vector.load %arg2[%c0_34, %c0_35, %c0_36, %c18] : memref<1x1x8x290xf32, #tpu.memory_space<vmem>>, vector<1x1x8x256xf32>
    %57 = vector.shape_cast %56 : vector<1x1x8x256xf32> to vector<8x256xf32>
    %cst_37 = arith.constant 0.000000e+00 : f32
    %58 = vector.broadcast %cst_37 : f32 to vector<8x256xf32>
    %59 = arith.select %34, %57, %58 : vector<8x256xi1>, vector<8x256xf32>
    %c40 = arith.constant 40 : index
    %c0_38 = arith.constant 0 : index
    %60 = vector.load %arg5[%c40, %c0_38] : memref<72x256xf32, #tpu.memory_space<vmem>>, vector<8x256xf32>
    tpu.vector_store %arg5[%c40, %c0_38], %59 {strides = array<i32>} : memref<72x256xf32, #tpu.memory_space<vmem>>, vector<8x256xf32>,
    %c0_39 = arith.constant 0 : index
    %c0_40 = arith.constant 0 : index
    %c0_41 = arith.constant 0 : index
    %c32_42 = arith.constant 32 : index
    %61 = vector.load %arg2[%c0_39, %c0_40, %c0_41, %c32_42] : memref<1x1x8x290xf32, #tpu.memory_space<vmem>>, vector<1x1x8x256xf32>
    %62 = vector.shape_cast %61 : vector<1x1x8x256xf32> to vector<8x256xf32>
    %cst_43 = arith.constant 0.000000e+00 : f32
    %63 = vector.broadcast %cst_43 : f32 to vector<8x256xf32>
    %64 = arith.select %25, %62, %63 : vector<8x256xi1>, vector<8x256xf32>
    %c48 = arith.constant 48 : index
    %c0_44 = arith.constant 0 : index
    %65 = vector.load %arg5[%c48, %c0_44] : memref<72x256xf32, #tpu.memory_space<vmem>>, vector<8x256xf32>
    tpu.vector_store %arg5[%c48, %c0_44], %64 {strides = array<i32>} : memref<72x256xf32, #tpu.memory_space<vmem>>, vector<8x256xf32>,
    %c0_45 = arith.constant 0 : index
    %c0_46 = arith.constant 0 : index
    %c0_47 = arith.constant 0 : index
    %c33 = arith.constant 33 : index
    %66 = vector.load %arg2[%c0_45, %c0_46, %c0_47, %c33] : memref<1x1x8x290xf32, #tpu.memory_space<vmem>>, vector<1x1x8x256xf32>
    %67 = vector.shape_cast %66 : vector<1x1x8x256xf32> to vector<8x256xf32>
    %c56 = arith.constant 56 : index
    %c0_48 = arith.constant 0 : index
    %68 = vector.load %arg5[%c56, %c0_48] : memref<72x256xf32, #tpu.memory_space<vmem>>, vector<8x256xf32>
    tpu.vector_store %arg5[%c56, %c0_48], %67 {strides = array<i32>} : memref<72x256xf32, #tpu.memory_space<vmem>>, vector<8x256xf32>,
    %c0_49 = arith.constant 0 : index
    %c0_50 = arith.constant 0 : index
    %c0_51 = arith.constant 0 : index
    %c34 = arith.constant 34 : index
    %69 = vector.load %arg2[%c0_49, %c0_50, %c0_51, %c34] : memref<1x1x8x290xf32, #tpu.memory_space<vmem>>, vector<1x1x8x256xf32>
    %70 = vector.shape_cast %69 : vector<1x1x8x256xf32> to vector<8x256xf32>
    %cst_52 = arith.constant 0.000000e+00 : f32
    %71 = vector.broadcast %cst_52 : f32 to vector<8x256xf32>
    %72 = arith.select %34, %70, %71 : vector<8x256xi1>, vector<8x256xf32>
    %c64 = arith.constant 64 : index
    %c0_53 = arith.constant 0 : index
    %73 = vector.load %arg5[%c64, %c0_53] : memref<72x256xf32, #tpu.memory_space<vmem>>, vector<8x256xf32>
    tpu.vector_store %arg5[%c64, %c0_53], %72 {strides = array<i32>} : memref<72x256xf32, #tpu.memory_space<vmem>>, vector<8x256xf32>,
    %c0_54 = arith.constant 0 : index
    %c0_55 = arith.constant 0 : index
    %74 = vector.load %arg3[%c0_54, %c0_55] : memref<8x72xf32, #tpu.memory_space<vmem>>, vector<8x72xf32>
    %c0_56 = arith.constant 0 : index
    %c0_57 = arith.constant 0 : index
    %75 = vector.load %arg5[%c0_56, %c0_57] : memref<72x256xf32, #tpu.memory_space<vmem>>, vector<72x256xf32>
    %cst_58 = arith.constant dense<0.000000e+00> : vector<8x256xf32>
    %76 = tpu.matmul %74, %75, %cst_58 {dimension_numbers = #tpu.dot_dimension_numbers<[1], [0], [0], [1], [0, 0, 1, 1], [], []>} : vector<8x72xf32>, vector<72x256xf32>, vector<8x256xf32> -> vector<8x256xf32>
    %c32_59 = arith.constant 32 : index
    %c0_60 = arith.constant 0 : index
    %77 = vector.load %arg5[%c32_59, %c0_60] : memref<72x256xf32, #tpu.memory_space<vmem>>, vector<8x256xf32>
    %78 = arith.addf %77, %76 : vector<8x256xf32>
    %c0_61 = arith.constant 0 : index
    %c0_62 = arith.constant 0 : index
    %c0_63 = arith.constant 0 : index
    %79 = vector.load %arg4[%c0_61, %c0_62, %c0_63] : memref<1x8x256xf32, #tpu.memory_space<vmem>>, vector<1x8x256xf32>
    %80 = vector.shape_cast %79 : vector<1x8x256xf32> to vector<8x256xf32>
    %81 = vector.shape_cast %78 : vector<8x256xf32> to vector<1x8x256xf32>
    tpu.vector_store %arg4[%c0_61, %c0_62, %c0_63], %81 {strides = array<i32>} : memref<1x8x256xf32, #tpu.memory_space<vmem>>, vector<1x8x256xf32>,
    return
  }
  func.func @transform_0(%arg0: i32, %arg1: i32) -> (i32, i32, i32, i32) {
    %c0_i32 = arith.constant 0 : i32
    %c0_i32_0 = arith.constant 0 : i32
    %c0_i32_1 = arith.constant 0 : i32
    return %arg0, %arg1, %c0_i32, %c0_i32_0 : i32, i32, i32, i32
  }
  func.func @transform_1(%arg0: i32, %arg1: i32) -> (i32, i32) {
    %c0_i32 = arith.constant 0 : i32
    %c0_i32_0 = arith.constant 0 : i32
    %c0_i32_1 = arith.constant 0 : i32
    return %c0_i32, %c0_i32_0 : i32, i32
  }
  func.func @transform_2(%arg0: i32, %arg1: i32) -> (i32, i32, i32) {
    %c0_i32 = arith.constant 0 : i32
    %c0_i32_0 = arith.constant 0 : i32
    return %arg0, %c0_i32, %arg1 : i32, i32, i32
  }
}

</mosaic_0001>

<llo_original>
// kernel: tpu_custom_call.1
$region0: #{tpu_custom_call.1}
  #allocation0 [shape = 'u32[]', space=smem, size = 0x4, offset = 0x4, fixed_abs, tag = 'smem constant byte address 0x4 - core index']
  #allocation1 [shape = 'u32[144,128]{1,0:T(1,128)}', space=vmem, size = 0x12000, scoped, tag = 'internal scratch']
  #allocation2 [shape = 'f32[72,256]{1,0:T(8,128)}', space=vmem, size = 0x12000, scoped, tag = 'scratch operand']
  %s0 = inlined_call_operand.hbm [shape: f32[2,1,8,290], index: 0, kind: input, shape index: {}]
  %s1 = inlined_call_operand.hbm [shape: f32[8,72], index: 1, kind: input, shape index: {}]
  %s2 = inlined_call_operand.hbm [shape: f32[2,8,256], index: 2, kind: output, shape index: {}]
  %s3 = sld [smem:[#allocation0]]
  $region49: #{tpu_custom_call.1} parent=0
    _
  %s5 = ssub.s32 1, %s3
  %s6 = scalar_select 0, %s5, %s3
  $region1: #{tpu_custom_call.1} parent=0
    #allocation3 [shape = 'u8[24576]{0}', space=vmem, size = 0x6000, scoped, tag = 'input window, operand 0']
    #allocation4 [shape = 's32[2]{0}', space=sflag, size = 0x8, scoped, tag = 'scoped memory for tpu_custom_call.1']
    #allocation5 [shape = 's32[2]{0}', space=sflag, size = 0x8, scoped, tag = 'scoped memory for tpu_custom_call.1']
    #allocation6 [shape = 'u8[4096]{0}', space=vmem, size = 0x1000, scoped, tag = 'input window, operand 1, single buffered']
    #allocation7 [shape = 's32[1]{0}', space=sflag, size = 0x4, scoped, tag = 'scoped memory for tpu_custom_call.1']
    #allocation8 [shape = 'u8[16384]{0}', space=vmem, size = 0x4000, scoped, tag = 'output window, operand 0']
    %7 = vsyncpa [#allocation4], 0
    %s8 = scalar_lea.sflag [#allocation4], 1
    %9 = vsyncpa %s8, 0
    %10 = vsyncpa [#allocation7], 0
    %11 = vsyncpa [#allocation5], 0
    %s12 = scalar_lea.sflag [#allocation5], 1
    %13 = vsyncpa %s12, 0
    loop: start=0, step=1, limit=4
    $region2: #{tpu_custom_call.1} parent=1 // loop_pre_header
      _
    $region3: #{tpu_custom_call.1} parent=1 // loop_header
      %s15 = sphi 0, %s19
      %p16 = scmp.ge.s32.totalorder %s15, 4
      %s22 = sphi 0, %s34
      %s23 = sphi 0, %s30
      %s24 = sphi 0, %s22
      %s25 = sphi 0, %s23
      %s26 = sphi 0, %s24
      %s27 = sphi 0, %s25
      %s39 = sphi 0, %s41
      %s42 = sphi 0, %s39
      %s43 = sphi 0, %s42
      %s59 = sphi 0, %s43
      %s63 = sphi 0, %s63
      %s65 = sphi 0, %s63
      %s66 = sphi 0, %s65
      %s80 = sphi 0, %s66
      %s88 = sphi 0, %s90
      %s91 = sphi 0, %s88
      %s92 = sphi 0, %s91
      %s108 = sphi 0, %s92
    $region4: #{tpu_custom_call.1} parent=1 // loop_header_branch
      %18 = sbr.rel (%p16) target = $region8
    $region5: #{tpu_custom_call.1} parent=1 // loop_body
      %s20 = ssub.s32 %s15, 1
      %s21 = ssub.s32 %s15, 2
      %s28 = sadd.s32 1, %s23
      %p29 = scmp.ge.s32.totalorder %s28, 1
      %s30 = scalar_select %p29, 0, %s28
      %s31 = sadd.s32 1, %s22
      %s32 = scalar_select %p29, %s31, %s22
      %p33 = scmp.ge.s32.totalorder %s32, 2
      %s34 = scalar_select %p33, 0, %s32
      %s35 = ssub.s32 %s22, %s34
      %s36 = ssub.s32 %s23, %s30
      %s37 = sor.u32 %s35, %s36
      %p38 = scmp.eq.s32.totalorder %s37, 0
      %s40 = sadd.s32 %s39, 1
      %s41 = scalar_select %p38, %s39, %s40
      %p44 = pneg %p38
      %p45 = scmp.eq.s32.totalorder %s15, 1
      %p46 = por %p44, %p45
      %p47 = scmp.ne.s32.totalorder %s39, %s42
      %p48 = scmp.eq.s32.totalorder %s15, 0
      %p49 = por %p47, %p48
      %p50 = scmp.ne.s32.totalorder %s39, %s42
      %p51 = scmp.eq.s32.totalorder %s20, 1
      %p52 = por %p50, %p51
      %p53 = scmp.ne.s32.totalorder %s42, %s43
      %p54 = scmp.eq.s32.totalorder %s20, 0
      %p55 = por %p53, %p54
      %p56 = scmp.ne.s32.totalorder %s42, %s43
      %p57 = scmp.eq.s32.totalorder %s21, 1
      %p58 = por %p56, %p57
      %p60 = scmp.ne.s32.totalorder %s43, %s59
      %p61 = scmp.eq.s32.totalorder %s21, 0
      %p62 = por %p60, %p61
      %s64 = sadd.s32 %s63, 1
      %p67 = scmp.eq.s32.totalorder %s15, 1
      %p68 = scmp.ne.s32.totalorder %s63, %s65
      %p69 = scmp.eq.s32.totalorder %s15, 0
      %p70 = por %p68, %p69
      %p71 = scmp.ne.s32.totalorder %s63, %s65
      %p72 = scmp.eq.s32.totalorder %s20, 1
      %p73 = por %p71, %p72
      %p74 = scmp.ne.s32.totalorder %s65, %s66
      %p75 = scmp.eq.s32.totalorder %s20, 0
      %p76 = por %p74, %p75
      %p77 = scmp.ne.s32.totalorder %s65, %s66
      %p78 = scmp.eq.s32.totalorder %s21, 1
      %p79 = por %p77, %p78
      %p81 = scmp.ne.s32.totalorder %s66, %s80
      %p82 = scmp.eq.s32.totalorder %s21, 0
      %p83 = por %p81, %p82
      %s84 = ssub.s32 %s22, %s34
      %s85 = ssub.s32 %s23, %s30
      %s86 = sor.u32 %s84, %s85
      %p87 = scmp.eq.s32.totalorder %s86, 0
      %s89 = sadd.s32 %s88, 1
      %s90 = scalar_select %p87, %s88, %s89
      %p93 = pneg %p87
      %p94 = scmp.eq.s32.totalorder %s15, 1
      %p95 = por %p93, %p94
      %p96 = scmp.ne.s32.totalorder %s88, %s91
      %p97 = scmp.eq.s32.totalorder %s15, 0
      %p98 = por %p96, %p97
      %p99 = scmp.ne.s32.totalorder %s88, %s91
      %p100 = scmp.eq.s32.totalorder %s20, 1
      %p101 = por %p99, %p100
      %p102 = scmp.ne.s32.totalorder %s91, %s92
      %p103 = scmp.eq.s32.totalorder %s20, 0
      %p104 = por %p102, %p103
      %p105 = scmp.ne.s32.totalorder %s91, %s92
      %p106 = scmp.eq.s32.totalorder %s21, 1
      %p107 = por %p105, %p106
      %p109 = scmp.ne.s32.totalorder %s92, %s108
      %p110 = scmp.eq.s32.totalorder %s21, 0
      %p111 = por %p109, %p110
      %p112 = scmp.le.s32.totalorder 1, %s15
      %p113 = scmp.lt.s32.totalorder %s15, 3
      %p114 = pnand %p112, %p113
      %p115 = pneg %p114
      // Predicated region
      $region9: #{tpu_custom_call.1} parent=5 // pred_check
        _
      $region10: #{tpu_custom_call.1} parent=5 // pred_check_branch
        %117 = sbr.rel (%p114) target = $region12
      $region11: #{tpu_custom_call.1} parent=5 // pred_region
        %s118 = ssub.s32 %s15, 1
        // Predicated region
        $region13: #{tpu_custom_call.1} parent=11 // pred_check
          %p119 = pneg %p76
        $region14: #{tpu_custom_call.1} parent=11 // pred_check_branch
          %121 = sbr.rel (%p119) target = $region16
        $region15: #{tpu_custom_call.1} parent=11 // pred_region
          %s123 = ssub.s32 128, 128
          %124 = vsyncadd [#allocation7], %s123
          %s126 = sshll.u32 [#allocation6], 4
          %s127 = int_to_ptr.vmem [resolvable:$true] %s126
          %129 = dma.hbm_to_vmem [thread:$0]  %s1, 128, %s127, [#allocation7]
        $region16: #{tpu_custom_call.1} parent=11 // pred_fallthru
          _
      $region12: #{tpu_custom_call.1} parent=5 // pred_fallthru
        _
      %p130 = scmp.lt.s32.totalorder %s15, 2
      // Predicated region
      $region17: #{tpu_custom_call.1} parent=5 // pred_check
        %p131 = pneg %p130
      $region18: #{tpu_custom_call.1} parent=5 // pred_check_branch
        %133 = sbr.rel (%p131) target = $region20
      $region19: #{tpu_custom_call.1} parent=5 // pred_region
        // Predicated region
        $region21: #{tpu_custom_call.1} parent=19 // pred_check
          %p134 = pneg %p49
        $region22: #{tpu_custom_call.1} parent=19 // pred_check_branch
          %136 = sbr.rel (%p134) target = $region24
        $region23: #{tpu_custom_call.1} parent=19 // pred_region
          %s137 = sand.u32 %s39, 1
          %s138 = scalar_lea.sflag [#allocation4], %s137
          %s139 = sand.u32 %s39, 1
          %s140 = smul.addr %s139, 24
          %s141 = scalar_lea.vmem [#allocation3], %s140
          %s143 = ssub.s32 384, 384
          %144 = vsyncadd %s138, %s143
          %s145 = smul.addr %s23, 3
          %s146 = smul.addr %s22, 3
          %s147 = sadd.s32 %s145, %s146
          %s148 = smul.addr %s147, 128
          %s149 = scalar_lea.hbm %s0, %s148
          %s151 = sshll.u32 %s141, 4
          %s152 = int_to_ptr.vmem [resolvable:$true] %s151
          %154 = dma.hbm_to_vmem [thread:$0]  %s149, 384, %s152, %s138
        $region24: #{tpu_custom_call.1} parent=19 // pred_fallthru
          _
      $region20: #{tpu_custom_call.1} parent=5 // pred_fallthru
        _
      %p155 = scmp.le.s32.totalorder 1, %s15
      %p156 = scmp.lt.s32.totalorder %s15, 3
      %p157 = pnand %p155, %p156
      %p158 = pneg %p157
      // Predicated region
      $region25: #{tpu_custom_call.1} parent=5 // pred_check
        _
      $region26: #{tpu_custom_call.1} parent=5 // pred_check_branch
        %160 = sbr.rel (%p157) target = $region28
      $region27: #{tpu_custom_call.1} parent=5 // pred_region
        %s161 = ssub.s32 %s15, 1
        %s162 = sand.u32 %s42, 1
        %s163 = scalar_lea.sflag [#allocation4], %s162
        %s164 = sand.u32 %s42, 1
        %s165 = smul.addr %s164, 24
        %s166 = scalar_lea.vmem [#allocation3], %s165
        // Predicated region
        $region29: #{tpu_custom_call.1} parent=27 // pred_check
          %p167 = pneg %p55
        $region30: #{tpu_custom_call.1} parent=27 // pred_check_branch
          %169 = sbr.rel (%p167) target = $region32
        $region31: #{tpu_custom_call.1} parent=27 // pred_region
          %170 = dma.done %s163, 384
        $region32: #{tpu_custom_call.1} parent=27 // pred_fallthru
          _
        // Predicated region
        $region33: #{tpu_custom_call.1} parent=27 // pred_check
          %p171 = pneg %p76
        $region34: #{tpu_custom_call.1} parent=27 // pred_check_branch
          %173 = sbr.rel (%p171) target = $region36
        $region35: #{tpu_custom_call.1} parent=27 // pred_region
          %174 = dma.done [#allocation7], 128
        $region36: #{tpu_custom_call.1} parent=27 // pred_fallthru
          _
        %s175 = sand.u32 %s42, 1
        %s176 = scalar_lea.sflag [#allocation4], %s175
        %s177 = sand.u32 %s42, 1
        %s178 = smul.addr %s177, 24
        %s179 = scalar_lea.vmem [#allocation3], %s178
        %p180 = pneg %p55
        %p181 = pneg %p52
        %p182 = pneg %p76
        %p183 = pneg %p73
        %p184 = pneg %p104
        %p185 = pneg %p101
        %s186 = sand.u32 %s91, 1
        %s187 = scalar_lea.sflag [#allocation5], %s186
        %s188 = sand.u32 %s91, 1
        %s189 = smul.addr %s188, 16
        %s190 = scalar_lea.vmem [#allocation8], %s189
        %s191 = smul.u32 2, %s25
        %v192 = vlaneseq
        %v193 = vand.u32 %v192, 127
        %v194 = vadd.s32 %v193, 128
        %vm195 = vcmp.lt.s32.totalorder %v193, 0
        %v196 = vsub.s32 0, %v193
        %v197 = vsel %vm195, %v196, %v193
        %v198 = vshrl.u32 %v197, 4
        %v199 = vand.u32 %v197, 15
        %v200 = vsub.s32 0, %v199
        %v201 = vsel %vm195, %v200, %v199
        %vm202 = vcmp.lt.s32.totalorder %v194, 0
        %v203 = vsub.s32 0, %v194
        %v204 = vsel %vm202, %v203, %v194
        %v205 = vshrl.u32 %v204, 4
        %v206 = vand.u32 %v204, 15
        %v207 = vsub.s32 0, %v206
        %v208 = vsel %vm202, %v207, %v206
        %vm209 = vcmp.ne.s32.totalorder %v201, 0
        %vm210 = vcmp.ne.s32.totalorder %v208, 0
        %vm211 = vcmp.lt.s32.totalorder %v201, 0
        %vm212 = vcmp.lt.s32.totalorder %v208, 0
        %vm213 = vmand %vm211, %vm209
        %vm214 = vmand %vm212, %vm210
        %v215 = vadd.s32 %v201, 16
        %v216 = vadd.s32 %v208, 16
        %v217 = vsel %vm213, %v215, %v201
        %v218 = vsel %vm214, %v216, %v208
        %v219 = vadd.s32 %v217, 4294967295
        %v220 = vadd.s32 %v218, 4294967295
        %vm221 = vcmp.ge.s32.totalorder %v219, 0
        %vm222 = vcmp.ge.s32.totalorder %v220, 0
        %vm223 = vcmp.lt.s32.totalorder %v219, 16
        %vm224 = vcmp.lt.s32.totalorder %v220, 16
        %vm225 = vmand %vm221, %vm223
        %vm226 = vmand %vm222, %vm224
        %v227 = vadd.s32 %v217, 1
        %v228 = vadd.s32 %v218, 1
        %vm229 = vcmp.ge.s32.totalorder %v227, 0
        %vm230 = vcmp.ge.s32.totalorder %v228, 0
        %vm231 = vcmp.lt.s32.totalorder %v227, 16
        %vm232 = vcmp.lt.s32.totalorder %v228, 16
        %vm233 = vmand %vm229, %vm231
        %vm234 = vmand %vm230, %vm232
        %v235 = vld [vmem:[%s166] sm:$0xff]
        %v236 = vld [vmem:[%s166 + $0x8] sm:$0xff]
        %v237 = vsel %vm225, %v235, 0.0
        %v238 = vsel %vm226, %v236, 0.0
        %239 = vst [vmem:[#allocation2] sm:$0xff] %v237
        %240 = vst [vmem:[#allocation2 + $0x8] sm:$0xff] %v238
        %v241 = vld [vmem:[%s166] sm:$0xff]
        %v242 = vld [vmem:[%s166 + $0x8] sm:$0xff]
        %v243 = vld [vmem:[%s166 + $0x10] sm:$0xff]
        %247 = vrot.lane.b32.xlu0 %v241, 127
        %v248 = vpop.permute.xlu0 %247
        %249 = vrot.lane.b32.xlu0 %v242, 127
        %v250 = vpop.permute.xlu0 %249
        %251 = vrot.lane.b32.xlu0 %v243, 127
        %v252 = vpop.permute.xlu0 %251
        %vm253 = vcmask 1039360
        %v254 = vsel %vm253, %v248, %v250
        %v255 = vsel %vm253, %v250, %v252
        %258 = vst [vmem:[#allocation2 + $0x10] sm:$0xff] %v254
        %259 = vst [vmem:[#allocation2 + $0x18] sm:$0xff] %v255
        %v260 = vld [vmem:[%s166] sm:$0xff]
        %v261 = vld [vmem:[%s166 + $0x8] sm:$0xff]
        %v262 = vld [vmem:[%s166 + $0x10] sm:$0xff]
        %266 = vrot.lane.b32.xlu0 %v260, 126
        %v267 = vpop.permute.xlu0 %266
        %268 = vrot.lane.b32.xlu0 %v261, 126
        %v269 = vpop.permute.xlu0 %268
        %270 = vrot.lane.b32.xlu0 %v262, 126
        %v271 = vpop.permute.xlu0 %270
        %vm272 = vcmask 1031168
        %v273 = vsel %vm272, %v267, %v269
        %v274 = vsel %vm272, %v269, %v271
        %v277 = vsel %vm233, %v273, 0.0
        %v278 = vsel %vm234, %v274, 0.0
        %279 = vst [vmem:[#allocation2 + $0x20] sm:$0xff] %v277
        %280 = vst [vmem:[#allocation2 + $0x28] sm:$0xff] %v278
        %v281 = vld [vmem:[%s166] sm:$0xff]
        %v282 = vld [vmem:[%s166 + $0x8] sm:$0xff]
        %v283 = vld [vmem:[%s166 + $0x10] sm:$0xff]
        %287 = vrot.lane.b32.xlu0 %v281, 112
        %v288 = vpop.permute.xlu0 %287
        %289 = vrot.lane.b32.xlu0 %v282, 112
        %v290 = vpop.permute.xlu0 %289
        %291 = vrot.lane.b32.xlu0 %v283, 112
        %v292 = vpop.permute.xlu0 %291
        %vm293 = vcmask 916480
        %v294 = vsel %vm293, %v288, %v290
        %v295 = vsel %vm293, %v290, %v292
        %v298 = vsel %vm225, %v294, 0.0
        %v299 = vsel %vm226, %v295, 0.0
        %300 = vst [vmem:[#allocation2 + $0x30] sm:$0xff] %v298
        %301 = vst [vmem:[#allocation2 + $0x38] sm:$0xff] %v299
        %v302 = vld [vmem:[%s166] sm:$0xff]
        %v303 = vld [vmem:[%s166 + $0x8] sm:$0xff]
        %v304 = vld [vmem:[%s166 + $0x10] sm:$0xff]
        %308 = vrot.lane.b32.xlu0 %v302, 111
        %v309 = vpop.permute.xlu0 %308
        %310 = vrot.lane.b32.xlu0 %v303, 111
        %v311 = vpop.permute.xlu0 %310
        %312 = vrot.lane.b32.xlu0 %v304, 111
        %v313 = vpop.permute.xlu0 %312
        %vm314 = vcmask 908288
        %v315 = vsel %vm314, %v309, %v311
        %v316 = vsel %vm314, %v311, %v313
        %319 = vst [vmem:[#allocation2 + $0x40] sm:$0xff] %v315
        %320 = vst [vmem:[#allocation2 + $0x48] sm:$0xff] %v316
        %v321 = vld [vmem:[%s166] sm:$0xff]
        %v322 = vld [vmem:[%s166 + $0x8] sm:$0xff]
        %v323 = vld [vmem:[%s166 + $0x10] sm:$0xff]
        %327 = vrot.lane.b32.xlu0 %v321, 110
        %v328 = vpop.permute.xlu0 %327
        %329 = vrot.lane.b32.xlu0 %v322, 110
        %v330 = vpop.permute.xlu0 %329
        %331 = vrot.lane.b32.xlu0 %v323, 110
        %v332 = vpop.permute.xlu0 %331
        %vm333 = vcmask 900096
        %v334 = vsel %vm333, %v328, %v330
        %v335 = vsel %vm333, %v330, %v332
        %v338 = vsel %vm233, %v334, 0.0
        %v339 = vsel %vm234, %v335, 0.0
        %340 = vst [vmem:[#allocation2 + $0x50] sm:$0xff] %v338
        %341 = vst [vmem:[#allocation2 + $0x58] sm:$0xff] %v339
        %v342 = vld [vmem:[%s166] sm:$0xff]
        %v343 = vld [vmem:[%s166 + $0x8] sm:$0xff]
        %v344 = vld [vmem:[%s166 + $0x10] sm:$0xff]
        %348 = vrot.lane.b32.xlu0 %v342, 96
        %v349 = vpop.permute.xlu0 %348
        %350 = vrot.lane.b32.xlu0 %v343, 96
        %v351 = vpop.permute.xlu0 %350
        %352 = vrot.lane.b32.xlu0 %v344, 96
        %v353 = vpop.permute.xlu0 %352
        %vm354 = vcmask 785408
        %v355 = vsel %vm354, %v349, %v351
        %v356 = vsel %vm354, %v351, %v353
        %v359 = vsel %vm225, %v355, 0.0
        %v360 = vsel %vm226, %v356, 0.0
        %361 = vst [vmem:[#allocation2 + $0x60] sm:$0xff] %v359
        %362 = vst [vmem:[#allocation2 + $0x68] sm:$0xff] %v360
        %v363 = vld [vmem:[%s166] sm:$0xff]
        %v364 = vld [vmem:[%s166 + $0x8] sm:$0xff]
        %v365 = vld [vmem:[%s166 + $0x10] sm:$0xff]
        %369 = vrot.lane.b32.xlu0 %v363, 95
        %v370 = vpop.permute.xlu0 %369
        %371 = vrot.lane.b32.xlu0 %v364, 95
        %v372 = vpop.permute.xlu0 %371
        %373 = vrot.lane.b32.xlu0 %v365, 95
        %v374 = vpop.permute.xlu0 %373
        %vm375 = vcmask 777216
        %v376 = vsel %vm375, %v370, %v372
        %v377 = vsel %vm375, %v372, %v374
        %380 = vst [vmem:[#allocation2 + $0x70] sm:$0xff] %v376
        %381 = vst [vmem:[#allocation2 + $0x78] sm:$0xff] %v377
        %v382 = vld [vmem:[%s166] sm:$0xff]
        %v383 = vld [vmem:[%s166 + $0x8] sm:$0xff]
        %v384 = vld [vmem:[%s166 + $0x10] sm:$0xff]
        %388 = vrot.lane.b32.xlu0 %v382, 94
        %v389 = vpop.permute.xlu0 %388
        %390 = vrot.lane.b32.xlu0 %v383, 94
        %v391 = vpop.permute.xlu0 %390
        %392 = vrot.lane.b32.xlu0 %v384, 94
        %v393 = vpop.permute.xlu0 %392
        %vm394 = vcmask 769024
        %v395 = vsel %vm394, %v389, %v391
        %v396 = vsel %vm394, %v391, %v393
        %v399 = vsel %vm233, %v395, 0.0
        %v400 = vsel %vm234, %v396, 0.0
        %401 = vst [vmem:[#allocation2 + $0x80] sm:$0xff] %v399
        %402 = vst [vmem:[#allocation2 + $0x88] sm:$0xff] %v400
        %v403 = vld [vmem:[#allocation6] sm:$0xff]
        %v404 = vld [vmem:[#allocation2] sm:$0xff]
        %v405 = vld [vmem:[#allocation2 + $0x8] sm:$0xff]
        %v406 = vld [vmem:[#allocation2 + $0x10] sm:$0xff]
        %v407 = vld [vmem:[#allocation2 + $0x18] sm:$0xff]
        %v408 = vld [vmem:[#allocation2 + $0x20] sm:$0xff]
        %v409 = vld [vmem:[#allocation2 + $0x28] sm:$0xff]
        %v410 = vld [vmem:[#allocation2 + $0x30] sm:$0xff]
        %v411 = vld [vmem:[#allocation2 + $0x38] sm:$0xff]
        %v412 = vld [vmem:[#allocation2 + $0x40] sm:$0xff]
        %v413 = vld [vmem:[#allocation2 + $0x48] sm:$0xff]
        %v414 = vld [vmem:[#allocation2 + $0x50] sm:$0xff]
        %v415 = vld [vmem:[#allocation2 + $0x58] sm:$0xff]
        %v416 = vld [vmem:[#allocation2 + $0x60] sm:$0xff]
        %v417 = vld [vmem:[#allocation2 + $0x68] sm:$0xff]
        %v418 = vld [vmem:[#allocation2 + $0x70] sm:$0xff]
        %v419 = vld [vmem:[#allocation2 + $0x78] sm:$0xff]
        %v420 = vld [vmem:[#allocation2 + $0x80] sm:$0xff]
        %v421 = vld [vmem:[#allocation2 + $0x88] sm:$0xff]
        %vm422 = vcmask 588800
        %v424 = vsel %vm422, %v403, 0
        %426 = vmatprep.subr.mxu0 %v405
        %427 = vmatpush1.msra.mxu0 %v404
        %428 = vmatprep.subr.mxu0 %v407
        %429 = vmatpush1.msra.mxu0 %v406
        %430 = vmatprep.subr.mxu0 %v409
        %431 = vmatpush1.msra.mxu0 %v408
        %432 = vmatprep.subr.mxu0 %v411
        %433 = vmatpush1.msra.mxu0 %v410
        %434 = vmatprep.subr.mxu0 %v413
        %435 = vmatpush1.msra.mxu0 %v412
        %436 = vmatprep.subr.mxu0 %v415
        %437 = vmatpush1.msra.mxu0 %v414
        %438 = vmatprep.subr.mxu0 %v417
        %439 = vmatpush1.msra.mxu0 %v416
        %440 = vmatprep.subr.mxu0 %v419
        %441 = vmatpush1.msra.mxu0 %v418
        %442 = vmatprep.subr.mxu0 %v421
        %443 = vmatpush1.msra.mxu0 %v420
        %444 = vmatprep.subr.mxu0 0.0
        %445 = vmatpush1.msra.mxu0 0.0
        %446 = vmatprep.subr.mxu0 0.0
        %447 = vmatpush1.msra.mxu0 0.0
        %448 = vmatprep.subr.mxu0 0.0
        %449 = vmatpush1.msra.mxu0 0.0
        %450 = vmatprep.subr.mxu0 0.0
        %451 = vmatpush1.msra.mxu0 0.0
        %452 = vmatprep.subr.mxu0 0.0
        %453 = vmatpush1.msra.mxu0 0.0
        %454 = vmatprep.subr.mxu0 0.0
        %455 = vmatpush1.msra.mxu0 0.0
        %456 = vmatprep.subr.mxu0 0.0
        %457 = vmatpush1.msra.mxu0 0.0
        %458 = vmatprep.subr.mxu0 0.0
        %459 = vmatpush1.msra.mxu0 0.0
        %460 = vmatprep.subr.mxu0 0.0
        %461 = vmatpush1.msra.mxu0 0.0
        %462 = vmatprep.subr.mxu0 0.0
        %463 = vmatpush1.msra.mxu0 0.0
        %464 = vmatprep.subr.mxu0 0.0
        %465 = vmatpush1.msra.mxu0 0.0
        %466 = vmatprep.subr.mxu0 0.0
        %467 = vmatpush1.msra.mxu0 0.0
        %468 = vmatprep.subr.mxu0 0.0
        %469 = vmatpush1.msra.mxu0 0.0
        %470 = vmatprep.subr.mxu0 0.0
        %471 = vmatpush1.msra.mxu0 0.0
        %472 = vmatprep.subr.mxu0 0.0
        %473 = vmatpush1.msra.mxu0 0.0
        %474 = vmatprep.subr.mxu0 0.0
        %475 = vmatpush1.msra.mxu0 0.0
        %476 = vmatprep.subr.mxu0 0.0
        %477 = vmatpush1.msra.mxu0 0.0
        %478 = vmatprep.subr.mxu0 0.0
        %479 = vmatpush1.msra.mxu0 0.0
        %480 = vmatprep.subr.mxu0 0.0
        %481 = vmatpush1.msra.mxu0 0.0
        %482 = vmatprep.subr.mxu0 0.0
        %483 = vmatpush1.msra.mxu0 0.0
        %484 = vmatprep.subr.mxu0 0.0
        %485 = vmatpush1.msra.mxu0 0.0
        %486 = vmatprep.subr.mxu0 0.0
        %487 = vmatpush1.msra.mxu0 0.0
        %488 = vmatprep.subr.mxu0 0.0
        %489 = vmatpush1.msra.mxu0 0.0
        %490 = vmatprep.mubr.f32.mxu0 0.0
        %491 = vmatmul.mubr.f32.gmra.mrb[0].mxu0 %v424
        %v492 = vpop.f32.mrb[0].mxu0
        %v493 = vadd.f32 0.0, %v492
        %v494 = vpop.f32.mrb[0].mxu0
        %v495 = vadd.f32 0.0, %v494
        %496 = vdwg.mxu0
        %v497 = vld [vmem:[#allocation2 + $0x40] sm:$0xff]
        %v498 = vld [vmem:[#allocation2 + $0x48] sm:$0xff]
        %v499 = vadd.f32 %v497, %v493
        %v500 = vadd.f32 %v498, %v495
        %501 = vst [vmem:[%s190] sm:$0xff] %v499
        %502 = vst [vmem:[%s190 + $0x8] sm:$0xff] %v500
        %s503 = sand.u32 %s91, 1
        %s504 = scalar_lea.sflag [#allocation5], %s503
        %s505 = sand.u32 %s91, 1
        %s506 = smul.addr %s505, 16
        %s507 = scalar_lea.vmem [#allocation8], %s506
        // Predicated region
        $region37: #{tpu_custom_call.1} parent=27 // pred_check
          %p508 = pneg %p101
        $region38: #{tpu_custom_call.1} parent=27 // pred_check_branch
          %510 = sbr.rel (%p508) target = $region40
        $region39: #{tpu_custom_call.1} parent=27 // pred_region
          %s511 = smul.u32 2, %s25
          %s513 = ssub.s32 256, 256
          %514 = vsyncadd %s504, %s513
          %s515 = smul.addr %s24, 2
          %s516 = sadd.s32 %s511, %s515
          %s517 = smul.addr %s516, 128
          %s518 = scalar_lea.hbm %s2, %s517
          %s520 = sshll.u32 %s507, 4
          %s521 = int_to_ptr.vmem [resolvable:$true] %s520
          %523 = dma.vmem_to_hbm [thread:$0]  %s521, 256, %s518, %s504
        $region40: #{tpu_custom_call.1} parent=27 // pred_fallthru
          _
      $region28: #{tpu_custom_call.1} parent=5 // pred_fallthru
        _
      %p524 = scmp.le.s32.totalorder 2, %s15
      // Predicated region
      $region41: #{tpu_custom_call.1} parent=5 // pred_check
        %p525 = pneg %p524
      $region42: #{tpu_custom_call.1} parent=5 // pred_check_branch
        %527 = sbr.rel (%p525) target = $region44
      $region43: #{tpu_custom_call.1} parent=5 // pred_region
        %s528 = ssub.s32 %s15, 2
        // Predicated region
        $region45: #{tpu_custom_call.1} parent=43 // pred_check
          %p529 = pneg %p107
        $region46: #{tpu_custom_call.1} parent=43 // pred_check_branch
          %531 = sbr.rel (%p529) target = $region48
        $region47: #{tpu_custom_call.1} parent=43 // pred_region
          %s532 = sand.u32 %s92, 1
          %s533 = scalar_lea.sflag [#allocation5], %s532
          %s534 = sand.u32 %s92, 1
          %s535 = smul.addr %s534, 16
          %s536 = scalar_lea.vmem [#allocation8], %s535
          %537 = dma.done %s533, 256
        $region48: #{tpu_custom_call.1} parent=43 // pred_fallthru
          _
      $region44: #{tpu_custom_call.1} parent=5 // pred_fallthru
        _
    $region6: #{tpu_custom_call.1} parent=1 // loop_footer
      %s19 = sadd.s32 1, %s15
    $region7: #{tpu_custom_call.1} parent=1 // loop_footer_branch
      %14 = sbr.rel target = $region3
    $region8: #{tpu_custom_call.1} parent=1 // loop_exit
      _
    %538 = vsyncpa [#allocation4], 1
    %s539 = scalar_lea.sflag [#allocation4], 1
    %540 = vsyncpa %s539, 1
    %541 = vsyncpa [#allocation7], 1
    %542 = vsyncpa [#allocation5], 1
    %s543 = scalar_lea.sflag [#allocation5], 1
    %544 = vsyncpa %s543, 1

</llo_original>
